<compile_context>
chip_gen: v6e
topology: v6e:2x2x1
jax: 0.10.0
libtpu: 0.0.40
codegen_flags: <defaults>
</compile_context>

<pallas_src>
import jax
import jax.numpy as jnp
from jax.experimental import pallas as pl
from jax.experimental.pallas import tpu as pltpu


LANE = 128
NEG_LARGE = -1e30  # excludes padded logits from softmax (exp underflows to 0)


def _round_up(n, m):
    return ((n + m - 1) // m) * m


def _make_kernel(num_in_p):
    def kernel(x_ref, w_ref, b_ref, o_ref):
        """x_ref: (TB, num_in_p) mxu dtype; w_ref: (3, P, P) mxu dtype;
        b_ref: (3, P) f32; o_ref: (TB, P) out dtype."""
        cdt = w_ref.dtype  # MXU input dtype; accumulation is always f32

        # l1 + ReLU (contract only over the real input columns; K padded by Mosaic)
        h1 = jnp.dot(x_ref[...], w_ref[0, :num_in_p, :],
                     preferred_element_type=jnp.float32) + b_ref[0:1, :]
        h1 = jnp.maximum(h1, 0.0)

        # l2 + ReLU
        h2 = jnp.dot(h1.astype(cdt), w_ref[1],
                     preferred_element_type=jnp.float32) + b_ref[1:2, :]
        h2 = jnp.maximum(h2, 0.0)

        # l3 (padded output columns carry a -1e30 f32 bias -> excluded from softmax)
        logits = jnp.dot(h2.astype(cdt), w_ref[2],
                         preferred_element_type=jnp.float32) + b_ref[2:3, :]

        # Softmax over the feature axis (nn.Softmax() on 2D input -> dim=1)
        m = jnp.max(logits, axis=-1, keepdims=True)
        e = jnp.exp(logits - m)
        inv = pl.reciprocal(jnp.sum(e, axis=-1, keepdims=True), approx=True)
        o_ref[...] = (e * inv).astype(o_ref.dtype)

    return kernel


def pack_params(params, mxu_dtype=jnp.bfloat16):
    """Zero-pad all feature dims to a common lane-aligned P and pack into two slabs.

    Call ONCE per weight set (hoisted out of the forward)."""
    w1, b1, w2, b2, w3, b3 = params
    dims = (w1.shape[0], w1.shape[1], w2.shape[1], w3.shape[1])
    P = max(_round_up(d, LANE) for d in dims)

    w_packed = jnp.zeros((3, P, P), mxu_dtype)
    for i, w in enumerate((w1, w2, w3)):
        w_packed = w_packed.at[i, : w.shape[0], : w.shape[1]].set(w.astype(mxu_dtype))

    # Biases stay f32. Layers 1/2: zero padding (ReLU keeps padded columns at 0).
    # Layer 3: padded columns get a huge negative bias so softmax ignores them.
    b_packed = jnp.zeros((3, P), jnp.float32)
    b_packed = b_packed.at[2].set(jnp.full((P,), NEG_LARGE, jnp.float32))
    for i, b in enumerate((b1, b2, b3)):
        b_packed = b_packed.at[i, : b.shape[-1]].set(b.reshape(-1).astype(jnp.float32))

    return w_packed, b_packed, P


def bluenet_forward(x, w_packed, b_packed, num_out, *, tb=512, out_dtype=None):
    """Forward pass.  w_packed/b_packed come from pack_params (precomputed)."""
    batch, num_in = x.shape
    _, P, _ = w_packed.shape
    mxu_dtype = w_packed.dtype
    if out_dtype is None:
        out_dtype = mxu_dtype
    num_in_p = _round_up(num_in, 8)

    # ---- batch tiling: big tiles, but >= 2 grid steps whenever batch allows
    #      (so "parallel" actually shards across both TCs on v7x). ----
    batch8 = _round_up(batch, 8)
    tb = _round_up(max(8, min(tb, batch8)), 8)
    n_tiles = max(1, pl.cdiv(batch8, tb))
    if batch8 >= 16:
        n_tiles = max(n_tiles, 2)
    tb = _round_up(pl.cdiv(batch8, n_tiles), 8)
    batch_p = tb * n_tiles
    grid = (n_tiles,)

    # x: pad batch to batch_p and features to num_in_p (8-aligned); no 128-lane pad.
    xp = jnp.zeros((batch_p, num_in_p), mxu_dtype)
    xp = xp.at[:batch, :num_in].set(x.astype(mxu_dtype))

    in_it = jnp.dtype(mxu_dtype).itemsize
    out_it = jnp.dtype(out_dtype).itemsize

    # Tight scoped-VMEM request derived from the actual tile footprint.
    tile_bytes = (
        2 * tb * num_in_p * in_it            # x tile (double-buffered)
        + 2 * tb * P * out_it                # out tile (double-buffered)
        + 2 * (3 * P * P * in_it + 3 * P * 4)  # resident weights/biases (2 bufs)
        + 4 * tb * P * 4                     # f32 intermediates headroom
    )
    vmem_limit = int(min(max(4 * 1024 * 1024, 2 * tile_bytes), 64 * 1024 * 1024))

    flops = 2 * batch_p * (num_in_p * P + P * P + P * P)
    bytes_accessed = (
        batch_p * num_in_p * in_it           # x
        + 3 * P * P * in_it                  # packed weights
        + 3 * P * 4                          # packed biases
        + batch_p * P * out_it               # output
    )

    out_padded = pl.pallas_call(
        _make_kernel(num_in_p),
        out_shape=jax.ShapeDtypeStruct((batch_p, P), out_dtype),
        grid=grid,
        in_specs=[
            pl.BlockSpec((tb, num_in_p), lambda i: (i, 0)),   # x: tiled over batch
            pl.BlockSpec((3, P, P), lambda i: (0, 0, 0)),     # weights: resident
            pl.BlockSpec((3, P), lambda i: (0, 0)),           # biases: resident
        ],
        out_specs=pl.BlockSpec((tb, P), lambda i: (i, 0)),
        compiler_params=pltpu.CompilerParams(
            dimension_semantics=("parallel",),                # megacore / 2 TCs on v7x
            vmem_limit_bytes=vmem_limit,
        ),
        cost_estimate=pl.CostEstimate(
            flops=flops,
            transcendentals=batch_p * P,                      # exp
            bytes_accessed=bytes_accessed,
        ),
    )(xp, w_packed, b_packed)

    return out_padded[:batch, :num_out]


def init_params(key, num_in, num_out):
    """Deterministic init mimicking PyTorch Linear default (U(-1/sqrt(fan_in), +))."""
    dims = [(num_in, 2 * num_in), (2 * num_in, 2 * num_out), (2 * num_out, num_out)]
    params = []
    for fan_in, fan_out in dims:
        key, kw, kb = jax.random.split(key, 3)
        bound = 1.0 / jnp.sqrt(jnp.float32(fan_in))
        # stored as (in, out) == transpose of PyTorch's (out, in) weight
        w = jax.random.uniform(kw, (fan_in, fan_out), jnp.float32, -bound, bound)
        b = jax.random.uniform(kb, (1, fan_out), jnp.float32, -bound, bound)
        params.extend([w, b])
    return tuple(params)


def reference_forward(x, params):
    w1, b1, w2, b2, w3, b3 = params
    h1 = jnp.maximum(x @ w1 + b1, 0.0)
    h2 = jnp.maximum(h1 @ w2 + b2, 0.0)
    logits = h2 @ w3 + b3
    return jax.nn.softmax(logits, axis=-1)


if __name__ == "__main__":
    num_in, num_out, batch = 32, 16, 64

    key = jax.random.PRNGKey(0)
    kx, kp = jax.random.split(key)
    x = jax.random.normal(kx, (batch, num_in), jnp.float32)
    params = init_params(kp, num_in, num_out)

    ref = reference_forward(x, params)

    # Default fast path: bf16 MXU inputs + bf16 output, f32 accumulation/elementwise.
    # Packing is done once per weight set (hoisted out of the forward).
    w_bf16, b_bf16, _ = pack_params(params, jnp.bfloat16)
    out = jax.block_until_ready(bluenet_forward(x, w_bf16, b_bf16, num_out))
    assert out.shape == (batch, num_out)
    out_f32 = out.astype(jnp.float32)
    assert jnp.allclose(out_f32, ref, atol=3e-2, rtol=3e-2), "mismatch vs reference (bf16 path)"
    assert jnp.allclose(jnp.sum(out_f32, axis=-1), 1.0, atol=2e-2), "softmax rows must ~sum to 1"

    # f32 MXU-input path (tighter check against the f32 reference).
    w_f32, b_f32, _ = pack_params(params, jnp.float32)
    out32 = jax.block_until_ready(
        bluenet_forward(x, w_f32, b_f32, num_out, out_dtype=jnp.float32))
    assert out32.shape == (batch, num_out)
    assert jnp.allclose(out32, ref, atol=2e-3, rtol=2e-3), "mismatch vs reference (f32 path)"

    print("KERNEL_OK")
</pallas_src>

<mosaic_0001>
module attributes {stable_mosaic.version = 11 : i64} {
  func.func @kernel(%arg0: i32, %arg1: memref<32x32xbf16, #tpu.memory_space<vmem>>, %arg2: memref<3x128x128xbf16, #tpu.memory_space<vmem>>, %arg3: memref<3x128xf32, #tpu.memory_space<vmem>>, %arg4: memref<32x128xbf16, #tpu.memory_space<vmem>>) attributes {dimension_semantics = [#tpu.dimension_semantics<parallel>], iteration_bounds = array<i64: 2>, scalar_prefetch = 0 : i64, scratch_operands = 0 : i64, tpu.core_type = #tpu.core_type<tc>, window_params = [{transform_indices = @transform_0, window_bounds = array<i64: 32, 32>}, {pipeline_mode = #tpu.pipeline_mode<synchronous>, transform_indices = @transform_1, window_bounds = array<i64: 3, 128, 128>}, {pipeline_mode = #tpu.pipeline_mode<synchronous>, transform_indices = @transform_2, window_bounds = array<i64: 3, 128>}, {transform_indices = @transform_3, window_bounds = array<i64: 32, 128>}]} {
    %c0 = arith.constant 0 : index
    %c0_0 = arith.constant 0 : index
    %0 = vector.load %arg1[%c0, %c0_0] : memref<32x32xbf16, #tpu.memory_space<vmem>>, vector<32x32xbf16>
    %c0_1 = arith.constant 0 : index
    %c0_2 = arith.constant 0 : index
    %c0_3 = arith.constant 0 : index
    %1 = vector.load %arg2[%c0_1, %c0_2, %c0_3] : memref<3x128x128xbf16, #tpu.memory_space<vmem>>, vector<1x32x128xbf16>
    %2 = vector.shape_cast %1 : vector<1x32x128xbf16> to vector<32x128xbf16>
    %cst = arith.constant dense<0.000000e+00> : vector<32x128xf32>
    %3 = tpu.matmul %0, %2, %cst {dimension_numbers = #tpu.dot_dimension_numbers<[1], [0], [0], [1], [0, 0, 1, 1], [], []>} : vector<32x32xbf16>, vector<32x128xbf16>, vector<32x128xf32> -> vector<32x128xf32>
    %c0_4 = arith.constant 0 : index
    %c0_5 = arith.constant 0 : index
    %4 = vector.load %arg3[%c0_4, %c0_5] : memref<3x128xf32, #tpu.memory_space<vmem>>, vector<1x128xf32>
    %5 = vector.broadcast %4 : vector<1x128xf32> to vector<32x128xf32>
    %6 = arith.addf %3, %5 : vector<32x128xf32>
    %cst_6 = arith.constant 0.000000e+00 : f32
    %7 = vector.broadcast %cst_6 : f32 to vector<32x128xf32>
    %8 = arith.maximumf %6, %7 : vector<32x128xf32>
    %9 = arith.truncf %8 : vector<32x128xf32> to vector<32x128xbf16>
    %c1 = arith.constant 1 : index
    %c0_7 = arith.constant 0 : index
    %c0_8 = arith.constant 0 : index
    %10 = vector.load %arg2[%c1, %c0_7, %c0_8] : memref<3x128x128xbf16, #tpu.memory_space<vmem>>, vector<1x128x128xbf16>
    %11 = vector.shape_cast %10 : vector<1x128x128xbf16> to vector<128x128xbf16>
    %cst_9 = arith.constant dense<0.000000e+00> : vector<32x128xf32>
    %12 = tpu.matmul %9, %11, %cst_9 {dimension_numbers = #tpu.dot_dimension_numbers<[1], [0], [0], [1], [0, 0, 1, 1], [], []>} : vector<32x128xbf16>, vector<128x128xbf16>, vector<32x128xf32> -> vector<32x128xf32>
    %c1_10 = arith.constant 1 : index
    %c0_11 = arith.constant 0 : index
    %13 = vector.load %arg3[%c1_10, %c0_11] : memref<3x128xf32, #tpu.memory_space<vmem>>, vector<1x128xf32>
    %14 = vector.broadcast %13 : vector<1x128xf32> to vector<32x128xf32>
    %15 = arith.addf %12, %14 : vector<32x128xf32>
    %cst_12 = arith.constant 0.000000e+00 : f32
    %16 = vector.broadcast %cst_12 : f32 to vector<32x128xf32>
    %17 = arith.maximumf %15, %16 : vector<32x128xf32>
    %18 = arith.truncf %17 : vector<32x128xf32> to vector<32x128xbf16>
    %c2 = arith.constant 2 : index
    %c0_13 = arith.constant 0 : index
    %c0_14 = arith.constant 0 : index
    %19 = vector.load %arg2[%c2, %c0_13, %c0_14] : memref<3x128x128xbf16, #tpu.memory_space<vmem>>, vector<1x128x128xbf16>
    %20 = vector.shape_cast %19 : vector<1x128x128xbf16> to vector<128x128xbf16>
    %cst_15 = arith.constant dense<0.000000e+00> : vector<32x128xf32>
    %21 = tpu.matmul %18, %20, %cst_15 {dimension_numbers = #tpu.dot_dimension_numbers<[1], [0], [0], [1], [0, 0, 1, 1], [], []>} : vector<32x128xbf16>, vector<128x128xbf16>, vector<32x128xf32> -> vector<32x128xf32>
    %c2_16 = arith.constant 2 : index
    %c0_17 = arith.constant 0 : index
    %22 = vector.load %arg3[%c2_16, %c0_17] : memref<3x128xf32, #tpu.memory_space<vmem>>, vector<1x128xf32>
    %23 = vector.broadcast %22 : vector<1x128xf32> to vector<32x128xf32>
    %24 = arith.addf %21, %23 : vector<32x128xf32>
    %cst_18 = arith.constant dense<0xFF800000> : vector<32xf32>
    %25 = vector.multi_reduction <maximumf>, %24, %cst_18 [1] : vector<32x128xf32> to vector<32xf32>
    %26 = vector.shape_cast %25 : vector<32xf32> to vector<32x1xf32>
    %27 = vector.broadcast %26 : vector<32x1xf32> to vector<32x128xf32>
    %28 = arith.subf %24, %27 : vector<32x128xf32>
    %29 = math.exp %28 : vector<32x128xf32>
    %cst_19 = arith.constant dense<0.000000e+00> : vector<32xf32>
    %30 = vector.multi_reduction <add>, %29, %cst_19 [1] : vector<32x128xf32> to vector<32xf32>
    %31 = vector.shape_cast %30 : vector<32xf32> to vector<32x1xf32>
    %32 = tpu.reciprocal %31 {approx = true} : vector<32x1xf32> -> vector<32x1xf32>
    %33 = vector.broadcast %32 : vector<32x1xf32> to vector<32x128xf32>
    %34 = arith.mulf %29, %33 : vector<32x128xf32>
    %35 = arith.truncf %34 : vector<32x128xf32> to vector<32x128xbf16>
    %c0_20 = arith.constant 0 : index
    %c0_21 = arith.constant 0 : index
    %36 = vector.load %arg4[%c0_20, %c0_21] : memref<32x128xbf16, #tpu.memory_space<vmem>>, vector<32x128xbf16>
    tpu.vector_store %arg4[%c0_20, %c0_21], %35 {strides = array<i32>} : memref<32x128xbf16, #tpu.memory_space<vmem>>, vector<32x128xbf16>,
    return
  }
  func.func @transform_0(%arg0: i32) -> (i32, i32) {
    %c0_i32 = arith.constant 0 : i32
    %c0_i32_0 = arith.constant 0 : i32
    return %arg0, %c0_i32 : i32, i32
  }
  func.func @transform_1(%arg0: i32) -> (i32, i32, i32) {
    %c0_i32 = arith.constant 0 : i32
    %c0_i32_0 = arith.constant 0 : i32
    %c0_i32_1 = arith.constant 0 : i32
    %c0_i32_2 = arith.constant 0 : i32
    return %c0_i32, %c0_i32_0, %c0_i32_1 : i32, i32, i32
  }
  func.func @transform_2(%arg0: i32) -> (i32, i32) {
    %c0_i32 = arith.constant 0 : i32
    %c0_i32_0 = arith.constant 0 : i32
    %c0_i32_1 = arith.constant 0 : i32
    return %c0_i32, %c0_i32_0 : i32, i32
  }
  func.func @transform_3(%arg0: i32) -> (i32, i32) {
    %c0_i32 = arith.constant 0 : i32
    %c0_i32_0 = arith.constant 0 : i32
    return %arg0, %c0_i32 : i32, i32
  }
}

</mosaic_0001>

<llo_original>
// kernel: tpu_custom_call.1
$region0: #{tpu_custom_call.1}
  #allocation0 [shape = 'u32[]', space=smem, size = 0x4, offset = 0x4, fixed_abs, tag = 'smem constant byte address 0x4 - core index']
  #allocation1 [shape = 'u32[144,128]{1,0:T(1,128)}', space=vmem, size = 0x12000, scoped, tag = 'internal scratch']
  %s0 = inlined_call_operand.vmem [shape: bf16[64,32], index: 0, kind: input, shape index: {}]
  %s1 = inlined_call_operand.hbm [shape: bf16[3,128,128], index: 1, kind: input, shape index: {}]
  %s2 = inlined_call_operand.vmem [shape: f32[3,128], index: 2, kind: input, shape index: {}]
  %s3 = inlined_call_operand.hbm [shape: bf16[64,128], index: 3, kind: output, shape index: {}]
  %s4 = sld [smem:[#allocation0]]
  $region49: #{tpu_custom_call.1} parent=0
    _
  %s6 = ssub.s32 1, %s4
  %s7 = scalar_select 0, %s6, %s4
  $region1: #{tpu_custom_call.1} parent=0
    #allocation2 [shape = 'u8[98304]{0}', space=vmem, size = 0x18000, scoped, tag = 'input window, operand 1, single buffered']
    #allocation3 [shape = 's32[2]{0}', space=sflag, size = 0x8, scoped, tag = 'scoped memory for tpu_custom_call.1']
    #allocation4 [shape = 's32[2]{0}', space=sflag, size = 0x8, scoped, tag = 'scoped memory for tpu_custom_call.1']
    #allocation5 [shape = 'u8[16384]{0}', space=vmem, size = 0x4000, scoped, tag = 'output window, operand 0']
    %8 = vsyncpa [#allocation3], 0
    %9 = vsyncpa [#allocation4], 0
    %s10 = scalar_lea.sflag [#allocation4], 1
    %11 = vsyncpa %s10, 0
    loop: start=0, step=1, limit=4
    $region2: #{tpu_custom_call.1} parent=1 // loop_pre_header
      _
    $region3: #{tpu_custom_call.1} parent=1 // loop_header
      %s13 = sphi 0, %s17
      %p14 = scmp.ge.s32.totalorder %s13, 4
      %s23 = sphi 0, %s25
      %s26 = sphi 0, %s23
      %s27 = sphi 0, %s26
      %s43 = sphi 0, %s27
      %s47 = sphi 0, %s47
      %s49 = sphi 0, %s47
      %s50 = sphi 0, %s49
      %s64 = sphi 0, %s50
      %s68 = sphi 0, %s68
      %s70 = sphi 0, %s68
      %s71 = sphi 0, %s70
      %s85 = sphi 0, %s71
      %s91 = sphi 0, %s93
      %s94 = sphi 0, %s91
      %s95 = sphi 0, %s94
      %s111 = sphi 0, %s95
    $region4: #{tpu_custom_call.1} parent=1 // loop_header_branch
      %16 = sbr.rel (%p14) target = $region8
    $region5: #{tpu_custom_call.1} parent=1 // loop_body
      %s18 = ssub.s32 %s13, 1
      %s19 = ssub.s32 %s13, 2
      %s20 = sadd.s32 %s13, 1
      %s21 = ssub.s32 %s13, %s20
      %p22 = scmp.eq.s32.totalorder %s21, 0
      %s24 = sadd.s32 %s23, 1
      %s25 = scalar_select %p22, %s23, %s24
      %p28 = pneg %p22
      %p29 = scmp.eq.s32.totalorder %s13, 1
      %p30 = por %p28, %p29
      %p31 = scmp.ne.s32.totalorder %s23, %s26
      %p32 = scmp.eq.s32.totalorder %s13, 0
      %p33 = por %p31, %p32
      %p34 = scmp.ne.s32.totalorder %s23, %s26
      %p35 = scmp.eq.s32.totalorder %s18, 1
      %p36 = por %p34, %p35
      %p37 = scmp.ne.s32.totalorder %s26, %s27
      %p38 = scmp.eq.s32.totalorder %s18, 0
      %p39 = por %p37, %p38
      %p40 = scmp.ne.s32.totalorder %s26, %s27
      %p41 = scmp.eq.s32.totalorder %s19, 1
      %p42 = por %p40, %p41
      %p44 = scmp.ne.s32.totalorder %s27, %s43
      %p45 = scmp.eq.s32.totalorder %s19, 0
      %p46 = por %p44, %p45
      %s48 = sadd.s32 %s47, 1
      %p51 = scmp.eq.s32.totalorder %s13, 1
      %p52 = scmp.ne.s32.totalorder %s47, %s49
      %p53 = scmp.eq.s32.totalorder %s13, 0
      %p54 = por %p52, %p53
      %p55 = scmp.ne.s32.totalorder %s47, %s49
      %p56 = scmp.eq.s32.totalorder %s18, 1
      %p57 = por %p55, %p56
      %p58 = scmp.ne.s32.totalorder %s49, %s50
      %p59 = scmp.eq.s32.totalorder %s18, 0
      %p60 = por %p58, %p59
      %p61 = scmp.ne.s32.totalorder %s49, %s50
      %p62 = scmp.eq.s32.totalorder %s19, 1
      %p63 = por %p61, %p62
      %p65 = scmp.ne.s32.totalorder %s50, %s64
      %p66 = scmp.eq.s32.totalorder %s19, 0
      %p67 = por %p65, %p66
      %s69 = sadd.s32 %s68, 1
      %p72 = scmp.eq.s32.totalorder %s13, 1
      %p73 = scmp.ne.s32.totalorder %s68, %s70
      %p74 = scmp.eq.s32.totalorder %s13, 0
      %p75 = por %p73, %p74
      %p76 = scmp.ne.s32.totalorder %s68, %s70
      %p77 = scmp.eq.s32.totalorder %s18, 1
      %p78 = por %p76, %p77
      %p79 = scmp.ne.s32.totalorder %s70, %s71
      %p80 = scmp.eq.s32.totalorder %s18, 0
      %p81 = por %p79, %p80
      %p82 = scmp.ne.s32.totalorder %s70, %s71
      %p83 = scmp.eq.s32.totalorder %s19, 1
      %p84 = por %p82, %p83
      %p86 = scmp.ne.s32.totalorder %s71, %s85
      %p87 = scmp.eq.s32.totalorder %s19, 0
      %p88 = por %p86, %p87
      %s89 = ssub.s32 %s13, %s20
      %p90 = scmp.eq.s32.totalorder %s89, 0
      %s92 = sadd.s32 %s91, 1
      %s93 = scalar_select %p90, %s91, %s92
      %p96 = pneg %p90
      %p97 = scmp.eq.s32.totalorder %s13, 1
      %p98 = por %p96, %p97
      %p99 = scmp.ne.s32.totalorder %s91, %s94
      %p100 = scmp.eq.s32.totalorder %s13, 0
      %p101 = por %p99, %p100
      %p102 = scmp.ne.s32.totalorder %s91, %s94
      %p103 = scmp.eq.s32.totalorder %s18, 1
      %p104 = por %p102, %p103
      %p105 = scmp.ne.s32.totalorder %s94, %s95
      %p106 = scmp.eq.s32.totalorder %s18, 0
      %p107 = por %p105, %p106
      %p108 = scmp.ne.s32.totalorder %s94, %s95
      %p109 = scmp.eq.s32.totalorder %s19, 1
      %p110 = por %p108, %p109
      %p112 = scmp.ne.s32.totalorder %s95, %s111
      %p113 = scmp.eq.s32.totalorder %s19, 0
      %p114 = por %p112, %p113
      %p115 = scmp.le.s32.totalorder 1, %s13
      %p116 = scmp.lt.s32.totalorder %s13, 3
      %p117 = pnand %p115, %p116
      %p118 = pneg %p117
      // Predicated region
      $region9: #{tpu_custom_call.1} parent=5 // pred_check
        _
      $region10: #{tpu_custom_call.1} parent=5 // pred_check_branch
        %120 = sbr.rel (%p117) target = $region12
      $region11: #{tpu_custom_call.1} parent=5 // pred_region
        %s121 = ssub.s32 %s13, 1
        // Predicated region
        $region13: #{tpu_custom_call.1} parent=11 // pred_check
          %p122 = pneg %p60
        $region14: #{tpu_custom_call.1} parent=11 // pred_check_branch
          %124 = sbr.rel (%p122) target = $region16
        $region15: #{tpu_custom_call.1} parent=11 // pred_region
          %s126 = ssub.s32 3072, 3072
          %127 = vsyncadd [#allocation3], %s126
          %s128 = sshll.u32 [#allocation2], 4
          %s129 = int_to_ptr.vmem [resolvable:$true] %s128
          %134 = dma.hbm_to_vmem [thread:$0]  %s1, 3072, %s129, [#allocation3], 64, 64, 4
        $region16: #{tpu_custom_call.1} parent=11 // pred_fallthru
          _
        // Predicated region
        $region17: #{tpu_custom_call.1} parent=11 // pred_check
          %p135 = pneg %p81
        $region18: #{tpu_custom_call.1} parent=11 // pred_check_branch
          %137 = sbr.rel (%p135) target = $region20
        $region19: #{tpu_custom_call.1} parent=11 // pred_region
          _
        $region20: #{tpu_custom_call.1} parent=11 // pred_fallthru
          _
      $region12: #{tpu_custom_call.1} parent=5 // pred_fallthru
        _
      %p138 = scmp.lt.s32.totalorder %s13, 2
      // Predicated region
      $region21: #{tpu_custom_call.1} parent=5 // pred_check
        %p139 = pneg %p138
      $region22: #{tpu_custom_call.1} parent=5 // pred_check_branch
        %141 = sbr.rel (%p139) target = $region24
      $region23: #{tpu_custom_call.1} parent=5 // pred_region
        // Predicated region
        $region25: #{tpu_custom_call.1} parent=23 // pred_check
          %p142 = pneg %p33
        $region26: #{tpu_custom_call.1} parent=23 // pred_check_branch
          %144 = sbr.rel (%p142) target = $region28
        $region27: #{tpu_custom_call.1} parent=23 // pred_region
          %s145 = smul.u32 4, %s13
          %p146 = scmp.lt.s32.totalorder %s145, 7
          %s147 = scalar_select %p146, %s145, 7
          %s148 = smul.addr %s147, 4
          %s149 = scalar_lea.vmem %s0, %s148
          %s150 = smul.u32 4, %s13
        $region28: #{tpu_custom_call.1} parent=23 // pred_fallthru
          _
      $region24: #{tpu_custom_call.1} parent=5 // pred_fallthru
        _
      %p151 = scmp.le.s32.totalorder 1, %s13
      %p152 = scmp.lt.s32.totalorder %s13, 3
      %p153 = pnand %p151, %p152
      %p154 = pneg %p153
      // Predicated region
      $region29: #{tpu_custom_call.1} parent=5 // pred_check
        _
      $region30: #{tpu_custom_call.1} parent=5 // pred_check_branch
        %156 = sbr.rel (%p153) target = $region32
      $region31: #{tpu_custom_call.1} parent=5 // pred_region
        %s157 = ssub.s32 %s13, 1
        // Predicated region
        $region33: #{tpu_custom_call.1} parent=31 // pred_check
          %p158 = pneg %p60
        $region34: #{tpu_custom_call.1} parent=31 // pred_check_branch
          %160 = sbr.rel (%p158) target = $region36
        $region35: #{tpu_custom_call.1} parent=31 // pred_region
          %161 = dma.done [#allocation3], 3072
        $region36: #{tpu_custom_call.1} parent=31 // pred_fallthru
          _
        %s162 = smul.u32 4, %s18
        %p163 = scmp.lt.s32.totalorder %s162, 7
        %s164 = scalar_select %p163, %s162, 7
        %s165 = smul.addr %s164, 4
        %s166 = scalar_lea.vmem %s0, %s165
        %p167 = pneg %p39
        %p168 = pneg %p36
        %p169 = pneg %p60
        %p170 = pneg %p57
        %p171 = pneg %p81
        %p172 = pneg %p78
        %p173 = pneg %p107
        %p174 = pneg %p104
        %s175 = sand.u32 %s94, 1
        %s176 = scalar_lea.sflag [#allocation4], %s175
        %s177 = sand.u32 %s94, 1
        %s178 = smul.addr %s177, 16
        %s179 = scalar_lea.vmem [#allocation5], %s178
        %s180 = smul.u32 4, %s18
        %p181 = scmp.lt.s32.totalorder %s180, 7
        %s182 = scalar_select %p181, %s180, 7
        %s183 = smul.addr %s182, 4
        %s184 = scalar_lea.vmem %s0, %s183
        %s185 = smul.u32 4, %s18
        %s186 = smul.u32 4, %s18
        %v188 = vld [vmem:[%s184] sm:$0xf]
        %v189 = vld [vmem:[%s184 + $0x4] sm:$0xf]
        %v190 = vld [vmem:[%s184 + $0x8] sm:$0xf]
        %v191 = vld [vmem:[%s184 + $0xc] sm:$0xf]
        %v192 = vld [vmem:[#allocation2] sm:$0xf]
        %v193 = vld [vmem:[#allocation2 + $0x4] sm:$0xf]
        %v194 = vld [vmem:[#allocation2 + $0x8] sm:$0xf]
        %v195 = vld [vmem:[#allocation2 + $0xc] sm:$0xf]
        %v196 = vld [vmem:[%s2] sm:$0x1]
        %v197 = vlaneseq
        %v198 = vshrl.u32 %v197, 7
        %v199 = vsub.s32 0, %v198
        %v200 = vrot.slane %v196, %v199
        %v205 = vunpack.c.l.b16 %v188
        %v206 = vunpack.c.l.b16 %v189
        %v207 = vunpack.c.l.b16 %v190
        %v208 = vunpack.c.l.b16 %v191
        %v209 = vpack.c.b16 %v206, %v205
        %v210 = vpack.c.b16 %v208, %v207
        %v215 = vunpack.c.l.b16 %v192
        %v216 = vunpack.c.l.b16 %v193
        %v217 = vunpack.c.l.b16 %v194
        %v218 = vunpack.c.l.b16 %v195
        %v219 = vpack.c.b16 %v216, %v215
        %v220 = vpack.c.b16 %v218, %v217
        %vm223 = vcmask 261120
        %v225 = vsel %vm223, %v209, 0
        %v228 = vsel %vm223, %v210, 0
        %230 = vmatprep.subr.bf16.mxu0 0
        %231 = vmatpush1.bf16.msra.mxu0 0
        %232 = vmatprep.subr.bf16.mxu0 0
        %233 = vmatpush1.bf16.msra.mxu0 0
        %234 = vmatprep.subr.bf16.mxu0 0
        %235 = vmatpush1.bf16.msra.mxu0 0
        %236 = vmatprep.subr.bf16.mxu0 0
        %237 = vmatpush1.bf16.msra.mxu0 0
        %238 = vmatprep.subr.bf16.mxu0 0
        %239 = vmatpush1.bf16.msra.mxu0 0
        %240 = vmatprep.subr.bf16.mxu0 0
        %241 = vmatpush1.bf16.msra.mxu0 0
        %242 = vmatprep.subr.bf16.mxu0 0
        %243 = vmatpush1.bf16.msra.mxu0 %v220
        %244 = vmatprep.subr.bf16.mxu0 0
        %245 = vmatpush1.bf16.msra.mxu0 %v219
        %246 = vmatprep.subr.bf16.mxu0 0
        %247 = vmatpush2.bf16.msra.mxu0 0
        %248 = vmatprep.subr.bf16.mxu0 0
        %249 = vmatpush2.bf16.msra.mxu0 0
        %250 = vmatprep.subr.bf16.mxu0 0
        %251 = vmatpush2.bf16.msra.mxu0 0
        %252 = vmatprep.subr.bf16.mxu0 0
        %253 = vmatpush2.bf16.msra.mxu0 0
        %254 = vmatprep.subr.bf16.mxu0 0
        %255 = vmatpush2.bf16.msra.mxu0 0
        %256 = vmatprep.subr.bf16.mxu0 0
        %257 = vmatpush2.bf16.msra.mxu0 0
        %258 = vmatprep.subr.bf16.mxu0 0
        %259 = vmatpush2.bf16.msra.mxu0 0
        %260 = vmatprep.subr.bf16.mxu0 0
        %261 = vmatpush2.bf16.msra.mxu0 0
        %262 = vmatprep.mubr.bf16.mxu0 0
        %263 = vmatmul.mubr.bf16.gmra.mxu0 %v225
        %v264 = vpop.f32.mrf.mxu0
        %v265 = vadd.f32 %v200, %v264
        %v266 = vpop.f32.mrf.mxu0
        %v267 = vpop.f32.mrf.mxu0
        %v268 = vadd.f32 %v200, %v267
        %v269 = vpop.f32.mrf.mxu0
        %270 = vmatprep.mubr.bf16.mxu0 0
        %271 = vmatmul.mubr.bf16.gmra.mxu0 %v228
        %v272 = vpop.f32.mrf.mxu0
        %v273 = vadd.f32 %v200, %v272
        %v274 = vpop.f32.mrf.mxu0
        %v275 = vpop.f32.mrf.mxu0
        %v276 = vadd.f32 %v200, %v275
        %v277 = vpop.f32.mrf.mxu0
        %278 = vdwg.mxu0
        %v279 = vmax.f32 %v265, 0.0
        %v280 = vmax.f32 %v268, 0.0
        %v281 = vmax.f32 %v273, 0.0
        %v282 = vmax.f32 %v276, 0.0
        %v283 = vpack.c.bf16 %v280, %v279
        %v284 = vpack.c.bf16 %v282, %v281
        %s285 = scalar_lea.vmem [#allocation2], 64
        %v286 = vld [vmem:[%s285] sm:$0xf]
        %v287 = vld [vmem:[%s285 + $0x4] sm:$0xf]
        %v288 = vld [vmem:[%s285 + $0x8] sm:$0xf]
        %v289 = vld [vmem:[%s285 + $0xc] sm:$0xf]
        %v290 = vld [vmem:[%s285 + $0x10] sm:$0xf]
        %v291 = vld [vmem:[%s285 + $0x14] sm:$0xf]
        %v292 = vld [vmem:[%s285 + $0x18] sm:$0xf]
        %v293 = vld [vmem:[%s285 + $0x1c] sm:$0xf]
        %v294 = vld [vmem:[%s285 + $0x20] sm:$0xf]
        %v295 = vld [vmem:[%s285 + $0x24] sm:$0xf]
        %v296 = vld [vmem:[%s285 + $0x28] sm:$0xf]
        %v297 = vld [vmem:[%s285 + $0x2c] sm:$0xf]
        %v298 = vld [vmem:[%s285 + $0x30] sm:$0xf]
        %v299 = vld [vmem:[%s285 + $0x34] sm:$0xf]
        %v300 = vld [vmem:[%s285 + $0x38] sm:$0xf]
        %v301 = vld [vmem:[%s285 + $0x3c] sm:$0xf]
        %v302 = vld [vmem:[%s2 + $0x1] sm:$0x1]
        %v303 = vlaneseq
        %v304 = vshrl.u32 %v303, 7
        %v305 = vsub.s32 0, %v304
        %v306 = vrot.slane %v302, %v305
        %v323 = vunpack.c.l.b16 %v286
        %v324 = vunpack.c.l.b16 %v287
        %v325 = vunpack.c.l.b16 %v288
        %v326 = vunpack.c.l.b16 %v289
        %v327 = vunpack.c.l.b16 %v290
        %v328 = vunpack.c.l.b16 %v291
        %v329 = vunpack.c.l.b16 %v292
        %v330 = vunpack.c.l.b16 %v293
        %v331 = vunpack.c.l.b16 %v294
        %v332 = vunpack.c.l.b16 %v295
        %v333 = vunpack.c.l.b16 %v296
        %v334 = vunpack.c.l.b16 %v297
        %v335 = vunpack.c.l.b16 %v298
        %v336 = vunpack.c.l.b16 %v299
        %v337 = vunpack.c.l.b16 %v300
        %v338 = vunpack.c.l.b16 %v301
        %v339 = vpack.c.b16 %v324, %v323
        %v340 = vpack.c.b16 %v326, %v325
        %v341 = vpack.c.b16 %v328, %v327
        %v342 = vpack.c.b16 %v330, %v329
        %v343 = vpack.c.b16 %v332, %v331
        %v344 = vpack.c.b16 %v334, %v333
        %v345 = vpack.c.b16 %v336, %v335
        %v346 = vpack.c.b16 %v338, %v337
        %355 = vmatprep.subr.bf16.mxu0 0
        %356 = vmatpush1.bf16.msra.mxu0 %v346
        %357 = vmatprep.subr.bf16.mxu0 0
        %358 = vmatpush1.bf16.msra.mxu0 %v345
        %359 = vmatprep.subr.bf16.mxu0 0
        %360 = vmatpush1.bf16.msra.mxu0 %v344
        %361 = vmatprep.subr.bf16.mxu0 0
        %362 = vmatpush1.bf16.msra.mxu0 %v343
        %363 = vmatprep.subr.bf16.mxu0 0
        %364 = vmatpush1.bf16.msra.mxu0 %v342
        %365 = vmatprep.subr.bf16.mxu0 0
        %366 = vmatpush1.bf16.msra.mxu0 %v341
        %367 = vmatprep.subr.bf16.mxu0 0
        %368 = vmatpush1.bf16.msra.mxu0 %v340
        %369 = vmatprep.subr.bf16.mxu0 0
        %370 = vmatpush1.bf16.msra.mxu0 %v339
        %371 = vmatprep.subr.bf16.mxu0 0
        %372 = vmatpush2.bf16.msra.mxu0 0
        %373 = vmatprep.subr.bf16.mxu0 0
        %374 = vmatpush2.bf16.msra.mxu0 0
        %375 = vmatprep.subr.bf16.mxu0 0
        %376 = vmatpush2.bf16.msra.mxu0 0
        %377 = vmatprep.subr.bf16.mxu0 0
        %378 = vmatpush2.bf16.msra.mxu0 0
        %379 = vmatprep.subr.bf16.mxu0 0
        %380 = vmatpush2.bf16.msra.mxu0 0
        %381 = vmatprep.subr.bf16.mxu0 0
        %382 = vmatpush2.bf16.msra.mxu0 0
        %383 = vmatprep.subr.bf16.mxu0 0
        %384 = vmatpush2.bf16.msra.mxu0 0
        %385 = vmatprep.subr.bf16.mxu0 0
        %386 = vmatpush2.bf16.msra.mxu0 0
        %387 = vmatprep.mubr.bf16.mxu0 0
        %388 = vmatmul.mubr.bf16.gmra.mxu0 %v283
        %v389 = vpop.f32.mrf.mxu0
        %v390 = vadd.f32 %v306, %v389
        %v391 = vpop.f32.mrf.mxu0
        %v392 = vpop.f32.mrf.mxu0
        %v393 = vadd.f32 %v306, %v392
        %v394 = vpop.f32.mrf.mxu0
        %395 = vmatprep.mubr.bf16.mxu0 0
        %396 = vmatmul.mubr.bf16.gmra.mxu0 %v284
        %v397 = vpop.f32.mrf.mxu0
        %v398 = vadd.f32 %v306, %v397
        %v399 = vpop.f32.mrf.mxu0
        %v400 = vpop.f32.mrf.mxu0
        %v401 = vadd.f32 %v306, %v400
        %v402 = vpop.f32.mrf.mxu0
        %403 = vdwg.mxu0
        %v404 = vmax.f32 %v390, 0.0
        %v405 = vmax.f32 %v393, 0.0
        %v406 = vmax.f32 %v398, 0.0
        %v407 = vmax.f32 %v401, 0.0
        %v408 = vpack.c.bf16 %v405, %v404
        %v409 = vpack.c.bf16 %v407, %v406
        %s410 = scalar_lea.vmem [#allocation2], 128
        %v411 = vld [vmem:[%s410] sm:$0xf]
        %v412 = vld [vmem:[%s410 + $0x4] sm:$0xf]
        %v413 = vld [vmem:[%s410 + $0x8] sm:$0xf]
        %v414 = vld [vmem:[%s410 + $0xc] sm:$0xf]
        %v415 = vld [vmem:[%s410 + $0x10] sm:$0xf]
        %v416 = vld [vmem:[%s410 + $0x14] sm:$0xf]
        %v417 = vld [vmem:[%s410 + $0x18] sm:$0xf]
        %v418 = vld [vmem:[%s410 + $0x1c] sm:$0xf]
        %v419 = vld [vmem:[%s410 + $0x20] sm:$0xf]
        %v420 = vld [vmem:[%s410 + $0x24] sm:$0xf]
        %v421 = vld [vmem:[%s410 + $0x28] sm:$0xf]
        %v422 = vld [vmem:[%s410 + $0x2c] sm:$0xf]
        %v423 = vld [vmem:[%s410 + $0x30] sm:$0xf]
        %v424 = vld [vmem:[%s410 + $0x34] sm:$0xf]
        %v425 = vld [vmem:[%s410 + $0x38] sm:$0xf]
        %v426 = vld [vmem:[%s410 + $0x3c] sm:$0xf]
        %v427 = vld [vmem:[%s2 + $0x2] sm:$0x1]
        %v428 = vlaneseq
        %v429 = vshrl.u32 %v428, 7
        %v430 = vsub.s32 0, %v429
        %v431 = vrot.slane %v427, %v430
        %v448 = vunpack.c.l.b16 %v411
        %v449 = vunpack.c.l.b16 %v412
        %v450 = vunpack.c.l.b16 %v413
        %v451 = vunpack.c.l.b16 %v414
        %v452 = vunpack.c.l.b16 %v415
        %v453 = vunpack.c.l.b16 %v416
        %v454 = vunpack.c.l.b16 %v417
        %v455 = vunpack.c.l.b16 %v418
        %v456 = vunpack.c.l.b16 %v419
        %v457 = vunpack.c.l.b16 %v420
        %v458 = vunpack.c.l.b16 %v421
        %v459 = vunpack.c.l.b16 %v422
        %v460 = vunpack.c.l.b16 %v423
        %v461 = vunpack.c.l.b16 %v424
        %v462 = vunpack.c.l.b16 %v425
        %v463 = vunpack.c.l.b16 %v426
        %v464 = vpack.c.b16 %v449, %v448
        %v465 = vpack.c.b16 %v451, %v450
        %v466 = vpack.c.b16 %v453, %v452
        %v467 = vpack.c.b16 %v455, %v454
        %v468 = vpack.c.b16 %v457, %v456
        %v469 = vpack.c.b16 %v459, %v458
        %v470 = vpack.c.b16 %v461, %v460
        %v471 = vpack.c.b16 %v463, %v462
        %480 = vmatprep.subr.bf16.mxu0 0
        %481 = vmatpush1.bf16.msra.mxu0 %v471
        %482 = vmatprep.subr.bf16.mxu0 0
        %483 = vmatpush1.bf16.msra.mxu0 %v470
        %484 = vmatprep.subr.bf16.mxu0 0
        %485 = vmatpush1.bf16.msra.mxu0 %v469
        %486 = vmatprep.subr.bf16.mxu0 0
        %487 = vmatpush1.bf16.msra.mxu0 %v468
        %488 = vmatprep.subr.bf16.mxu0 0
        %489 = vmatpush1.bf16.msra.mxu0 %v467
        %490 = vmatprep.subr.bf16.mxu0 0
        %491 = vmatpush1.bf16.msra.mxu0 %v466
        %492 = vmatprep.subr.bf16.mxu0 0
        %493 = vmatpush1.bf16.msra.mxu0 %v465
        %494 = vmatprep.subr.bf16.mxu0 0
        %495 = vmatpush1.bf16.msra.mxu0 %v464
        %496 = vmatprep.subr.bf16.mxu0 0
        %497 = vmatpush2.bf16.msra.mxu0 0
        %498 = vmatprep.subr.bf16.mxu0 0
        %499 = vmatpush2.bf16.msra.mxu0 0
        %500 = vmatprep.subr.bf16.mxu0 0
        %501 = vmatpush2.bf16.msra.mxu0 0
        %502 = vmatprep.subr.bf16.mxu0 0
        %503 = vmatpush2.bf16.msra.mxu0 0
        %504 = vmatprep.subr.bf16.mxu0 0
        %505 = vmatpush2.bf16.msra.mxu0 0
        %506 = vmatprep.subr.bf16.mxu0 0
        %507 = vmatpush2.bf16.msra.mxu0 0
        %508 = vmatprep.subr.bf16.mxu0 0
        %509 = vmatpush2.bf16.msra.mxu0 0
        %510 = vmatprep.subr.bf16.mxu0 0
        %511 = vmatpush2.bf16.msra.mxu0 0
        %512 = vmatprep.mubr.bf16.mxu0 0
        %513 = vmatmul.mubr.bf16.gmra.mxu0 %v408
        %v514 = vpop.f32.mrf.mxu0
        %v515 = vadd.f32 %v431, %v514
        %v516 = vpop.f32.mrf.mxu0
        %v517 = vpop.f32.mrf.mxu0
        %v518 = vadd.f32 %v431, %v517
        %v519 = vpop.f32.mrf.mxu0
        %520 = vmatprep.mubr.bf16.mxu0 0
        %521 = vmatmul.mubr.bf16.gmra.mxu0 %v409
        %v522 = vpop.f32.mrf.mxu0
        %v523 = vadd.f32 %v431, %v522
        %v524 = vpop.f32.mrf.mxu0
        %v525 = vpop.f32.mrf.mxu0
        %v526 = vadd.f32 %v431, %v525
        %v527 = vpop.f32.mrf.mxu0
        %528 = vdwg.mxu0
        %529 = vmax.xlane.f32.xlu0 %v515
        %v530 = vpop.xlane.xlu0 %529
        %531 = vmax.xlane.f32.xlu0 %v518
        %v532 = vpop.xlane.xlu0 %531
        %533 = vmax.xlane.f32.xlu0 %v523
        %v534 = vpop.xlane.xlu0 %533
        %535 = vmax.xlane.f32.xlu0 %v526
        %v536 = vpop.xlane.xlu0 %535
        %v537 = vsub.f32 %v515, %v530
        %v538 = vsub.f32 %v518, %v532
        %v539 = vsub.f32 %v523, %v534
        %v540 = vsub.f32 %v526, %v536
        %v541 = vmul.f32 %v537, 1.442695
        %v542 = vpow.pop %v541
        %v543 = vmul.f32 %v538, 1.442695
        %v544 = vpow.pop %v543
        %v545 = vmul.f32 %v539, 1.442695
        %v546 = vpow.pop %v545
        %v547 = vmul.f32 %v540, 1.442695
        %v548 = vpow.pop %v547
        %549 = vadd.xlane.f32.xlu0 %v542
        %v550 = vpop.xlane.xlu0 %549
        %551 = vadd.xlane.f32.xlu0 %v544
        %v552 = vpop.xlane.xlu0 %551
        %553 = vadd.xlane.f32.xlu0 %v546
        %v554 = vpop.xlane.xlu0 %553
        %555 = vadd.xlane.f32.xlu0 %v548
        %v556 = vpop.xlane.xlu0 %555
        %v557 = vrcp.pop %v550
        %v558 = vrcp.pop %v552
        %v559 = vrcp.pop %v554
        %v560 = vrcp.pop %v556
        %v561 = vmul.f32 %v542, %v557
        %v562 = vmul.f32 %v544, %v558
        %v563 = vmul.f32 %v546, %v559
        %v564 = vmul.f32 %v548, %v560
        %v565 = vpack.c.bf16 %v562, %v561
        %v566 = vpack.c.bf16 %v564, %v563
        %v569 = vunpack.c.l.b16 %v565
        %v570 = vunpack.c.h.b16 %v565
        %v571 = vunpack.c.l.b16 %v566
        %v572 = vunpack.c.h.b16 %v566
        %v573 = vpack.c.b16 %v569, %v569
        %v574 = vpack.c.b16 %v570, %v570
        %v575 = vpack.c.b16 %v571, %v571
        %v576 = vpack.c.b16 %v572, %v572
        %581 = vst [vmem:[%s179] sm:$0xf] %v573
        %582 = vst [vmem:[%s179 + $0x4] sm:$0xf] %v574
        %583 = vst [vmem:[%s179 + $0x8] sm:$0xf] %v575
        %584 = vst [vmem:[%s179 + $0xc] sm:$0xf] %v576
        %s585 = sand.u32 %s94, 1
        %s586 = scalar_lea.sflag [#allocation4], %s585
        %s587 = sand.u32 %s94, 1
        %s588 = smul.addr %s587, 16
        %s589 = scalar_lea.vmem [#allocation5], %s588
        // Predicated region
        $region37: #{tpu_custom_call.1} parent=31 // pred_check
          %p590 = pneg %p104
        $region38: #{tpu_custom_call.1} parent=31 // pred_check_branch
          %592 = sbr.rel (%p590) target = $region40
        $region39: #{tpu_custom_call.1} parent=31 // pred_region
          %s593 = smul.u32 4, %s18
          %s595 = ssub.s32 256, 256
          %596 = vsyncadd %s586, %s595
          %s597 = smul.addr %s593, 64
          %s598 = scalar_lea.hbm %s3, %s597
          %s599 = sshll.u32 %s589, 4
          %s600 = int_to_ptr.vmem [resolvable:$true] %s599
          %605 = dma.vmem_to_hbm [thread:$0]  %s600, 256, %s598, %s586, 64, 64, 4
        $region40: #{tpu_custom_call.1} parent=31 // pred_fallthru
          _
      $region32: #{tpu_custom_call.1} parent=5 // pred_fallthru
        _
      %p606 = scmp.le.s32.totalorder 2, %s13
      // Predicated region
      $region41: #{tpu_custom_call.1} parent=5 // pred_check
        %p607 = pneg %p606
      $region42: #{tpu_custom_call.1} parent=5 // pred_check_branch
        %609 = sbr.rel (%p607) target = $region44
      $region43: #{tpu_custom_call.1} parent=5 // pred_region
        %s610 = ssub.s32 %s13, 2
        // Predicated region
        $region45: #{tpu_custom_call.1} parent=43 // pred_check
          %p611 = pneg %p110
        $region46: #{tpu_custom_call.1} parent=43 // pred_check_branch
          %613 = sbr.rel (%p611) target = $region48
        $region47: #{tpu_custom_call.1} parent=43 // pred_region
          %s614 = sand.u32 %s95, 1
          %s615 = scalar_lea.sflag [#allocation4], %s614
          %s616 = sand.u32 %s95, 1
          %s617 = smul.addr %s616, 16
          %s618 = scalar_lea.vmem [#allocation5], %s617
          %619 = dma.done %s615, 256
        $region48: #{tpu_custom_call.1} parent=43 // pred_fallthru
          _
      $region44: #{tpu_custom_call.1} parent=5 // pred_fallthru
        _
    $region6: #{tpu_custom_call.1} parent=1 // loop_footer
      %s17 = sadd.s32 1, %s13
    $region7: #{tpu_custom_call.1} parent=1 // loop_footer_branch
      %12 = sbr.rel target = $region3
    $region8: #{tpu_custom_call.1} parent=1 // loop_exit
      _
    %620 = vsyncpa [#allocation3], 1
    %s621 = scalar_lea.sflag [#allocation3], 1
    %622 = vsyncpa %s621, 1
    %623 = vsyncpa [#allocation4], 1
    %s624 = scalar_lea.sflag [#allocation4], 1
    %625 = vsyncpa %s624, 1

</llo_original>
